<compile_context>
chip_gen: v5e
topology: v5e:2x2
jax: 0.10.0
libtpu: 0.0.40
codegen_flags: <defaults>
</compile_context>

<pallas_src>
import functools

import jax
import jax.numpy as jnp
from jax.experimental import pallas as pl
from jax.experimental.pallas import tpu as pltpu


# ---------------------------------------------------------------------------
# Nearest-neighbor 3D interpolation (matches F.interpolate mode='nearest').
# Integer upsample factors (the CogVideoX case) use broadcast+reshape instead of
# three chained gathers; the general path is kept as a fallback.
# ---------------------------------------------------------------------------
def nearest_interp_3d(x, size):
    B, C, D, H, W = x.shape
    Do, Ho, Wo = size
    if Do % D == 0 and Ho % H == 0 and Wo % W == 0:
        rd, rh, rw = Do // D, Ho // H, Wo // W
        x = jnp.broadcast_to(x[:, :, :, None, :, None, :, None],
                             (B, C, D, rd, H, rh, W, rw))
        return x.reshape(B, C, Do, Ho, Wo)

    def idx(n_in, n_out):
        return jnp.floor(jnp.arange(n_out) * (n_in / n_out)).astype(jnp.int32)

    x = jnp.take(x, idx(D, Do), axis=2)
    x = jnp.take(x, idx(H, Ho), axis=3)
    x = jnp.take(x, idx(W, Wo), axis=4)
    return x


def _choose_s_tile(S, per_lane_bytes, budget_bytes):
    """Largest multiple-of-128 lane tile whose per-step footprint fits the budget."""
    s_pad = pl.cdiv(S, 128) * 128
    st = (budget_bytes // max(per_lane_bytes, 1)) // 128 * 128
    return int(max(128, min(st, s_pad)))


# ---------------------------------------------------------------------------
# Phase 1: per-(batch, channel) [sum, sum_sq] over S, MXU lane contraction
# ---------------------------------------------------------------------------
def _stats_kernel(f_ref, sums_ref, *, s_tile, s_total):
    s = pl.program_id(1)

    @pl.when(s == 0)
    def _():
        sums_ref[...] = jnp.zeros_like(sums_ref)

    f = f_ref[0]                                               # (Cf, St) native dtype
    if s_total % s_tile != 0:
        # Mask lanes past the end of S (the partial last tile holds unspecified data).
        col = jax.lax.broadcasted_iota(jnp.int32, f.shape, 1)
        f = jnp.where(s * s_tile + col < s_total, f, jnp.zeros_like(f))

    hi = jax.lax.Precision.HIGHEST
    # Channel sums via MXU contraction over the lane axis (f32 accumulation):
    # no f32 cast for the plain sum, no XLU reduce tree.
    s1 = jnp.dot(f, jnp.ones((s_tile, 1), f.dtype),
                 preferred_element_type=jnp.float32, precision=hi)          # (Cf, 1)
    f32 = f.astype(jnp.float32)
    s2 = jnp.dot(f32 * f32, jnp.ones((s_tile, 1), jnp.float32),
                 preferred_element_type=jnp.float32, precision=hi)          # (Cf, 1)
    sums_ref[0] += jnp.concatenate([s1, s2], axis=1)                         # (Cf, 2)


# ---------------------------------------------------------------------------
# Phase 2: normalize + fused 1x1x1 convs (+bias via ones channel) + modulation
# ---------------------------------------------------------------------------
def _apply_kernel(f_ref, zq_ref, ss_ref, wc_ref, out_ref, *, f_channels):
    f = f_ref[0]                                   # (Cf, St)   native dtype
    zq = zq_ref[0]                                 # (Czp, St)  native dtype (+ones/zero rows)
    ss = ss_ref[0]                                 # (Cf, 2)    f32 [scale, shift]

    # Both pointwise convs AND their biases as one MXU matmul, f32 accumulation.
    conv = jnp.dot(wc_ref[...], zq, preferred_element_type=jnp.float32,
                   precision=jax.lax.Precision.HIGHEST)                      # (2Cf, St)
    conv_y = conv[:f_channels]
    conv_b = conv[f_channels:]

    if jnp.dtype(out_ref.dtype) == jnp.dtype(jnp.bfloat16):
        # bf16 VALU path: output is bf16 anyway; halves VPU work on v6e/v7x.
        # TODO(synk): keep the f32 path on v5e (no bf16 VALU) via a chip switch.
        scale = ss[:, 0:1].astype(jnp.bfloat16)
        shift = ss[:, 1:2].astype(jnp.bfloat16)
        norm_f = f.astype(jnp.bfloat16) * scale + shift
        out_ref[0] = norm_f * conv_y.astype(jnp.bfloat16) + conv_b.astype(jnp.bfloat16)
    else:
        norm_f = f.astype(jnp.float32) * ss[:, 0:1] + ss[:, 1:2]
        out_ref[0] = (norm_f * conv_y + conv_b).astype(out_ref.dtype)


# ---------------------------------------------------------------------------
# Wrapper
# ---------------------------------------------------------------------------
def cogvideox_spatial_norm_3d(f, zq, params, *, groups, eps=1e-6,
                              vmem_budget_bytes=32 * 1024 * 1024,
                              vmem_limit_bytes=48 * 1024 * 1024):
    """f: (B, Cf, T, H, W), zq: (B, Cz, Tz, Hz, Wz). Returns (new_f, new_conv_cache).

    params (PyTorch layouts, 1x1x1 conv kernels squeezed):
      conv_y_w / conv_b_w : (Cf, Cz)
      conv_y_b / conv_b_b : (Cf,)
      gn_gamma / gn_beta  : (Cf,)
    """
    B, Cf, T, H, W = f.shape
    G = groups
    Cg = Cf // G
    assert Cg * G == Cf, "f_channels must be divisible by groups"

    # zq -> f's temporal/spatial size (nearest), matching the torch odd-T branch.
    if T > 1 and T % 2 == 1:
        z_first = nearest_interp_3d(zq[:, :, :1], (1, H, W))
        z_rest = nearest_interp_3d(zq[:, :, 1:], (T - 1, H, W))
        zq_r = jnp.concatenate([z_first, z_rest], axis=2)
    else:
        zq_r = nearest_interp_3d(zq, (T, H, W))
    Cz = zq_r.shape[1]
    S = T * H * W

    # Free reshapes: channels-first flattened (B, C, S) -- no HBM transposes.
    f_flat = f.reshape(B, Cf, S)
    zq_flat = zq_r.reshape(B, Cz, S)

    # Augment zq with a ones channel (conv biases ride the MXU matmul); pad the
    # channel axis to a multiple of 8 with zero channels (MXU-friendly K).
    Czp = ((Cz + 1 + 7) // 8) * 8
    pad_c = Czp - (Cz + 1)
    aug = [zq_flat, jnp.ones((B, 1, S), zq_flat.dtype)]
    if pad_c:
        aug.append(jnp.zeros((B, pad_c, S), zq_flat.dtype))
    zq_aug = jnp.concatenate(aug, axis=1)                      # (B, Czp, S)

    def _aug_w(w, b):
        parts = [w, b.reshape(Cf, 1)]
        if pad_c:
            parts.append(jnp.zeros((Cf, pad_c), w.dtype))
        return jnp.concatenate(parts, axis=1)

    wc = jnp.concatenate([_aug_w(params["conv_y_w"], params["conv_y_b"]),
                          _aug_w(params["conv_b_w"], params["conv_b_b"])],
                         axis=0).astype(zq_flat.dtype)         # (2Cf, Czp)

    # --- per-phase S tiles: budget from the full per-step footprint ------------
    dt = jnp.dtype(f.dtype).itemsize
    # phase 1: double-buffered f block + masked copy + f32 square temporaries
    p1_per_lane = Cf * (3 * dt + 8)
    # phase 2: double-buffered f/zq/out blocks + f32 conv/norm temporaries
    p2_per_lane = (4 * Cf + 2 * Czp) * dt + 20 * Cf
    St1 = _choose_s_tile(S, p1_per_lane, vmem_budget_bytes)
    St2 = _choose_s_tile(S, p2_per_lane, vmem_budget_bytes)
    nS1 = pl.cdiv(S, St1)
    nS2 = pl.cdiv(S, St2)

    # ---- phase 1: GroupNorm statistics ----------------------------------------
    stats = pl.pallas_call(
        functools.partial(_stats_kernel, s_tile=St1, s_total=S),
        out_shape=jax.ShapeDtypeStruct((B, Cf, 2), jnp.float32),
        grid_spec=pltpu.PrefetchScalarGridSpec(
            num_scalar_prefetch=0,
            grid=(B, nS1),
            in_specs=[pl.BlockSpec((1, Cf, St1), lambda b, s: (b, 0, s))],
            out_specs=pl.BlockSpec((1, Cf, 2), lambda b, s: (b, 0, 0)),
        ),
        compiler_params=pltpu.CompilerParams(
            dimension_semantics=("parallel", "arbitrary"),
            vmem_limit_bytes=vmem_limit_bytes),
    )(f_flat)

    # ---- finalize (tiny, plain jnp): group fold -> per-channel (scale, shift) --
    # NOTE: one-pass E[x^2]-E[x]^2 in f32; adequate for unit-scale activations.
    inv_n = 1.0 / float(S * Cg)
    sums_g = stats.reshape(B, G, Cg, 2).sum(axis=2)            # (B, G, 2)
    mean_g = sums_g[..., 0] * inv_n
    var_g = jnp.maximum(sums_g[..., 1] * inv_n - mean_g * mean_g, 0.0)
    rstd_g = jax.lax.rsqrt(var_g + jnp.float32(eps))
    gamma = params["gn_gamma"].astype(jnp.float32)
    beta = params["gn_beta"].astype(jnp.float32)
    scale = jnp.repeat(rstd_g, Cg, axis=1) * gamma[None, :]    # (B, Cf)  rstd*gamma
    shift = beta[None, :] - jnp.repeat(mean_g, Cg, axis=1) * scale
    scaleshift = jnp.stack([scale, shift], axis=-1)            # (B, Cf, 2) f32

    # ---- phase 2: normalize + fused convs(+bias) + modulation, fully parallel --
    out = pl.pallas_call(
        functools.partial(_apply_kernel, f_channels=Cf),
        out_shape=jax.ShapeDtypeStruct((B, Cf, S), f.dtype),
        grid_spec=pltpu.PrefetchScalarGridSpec(
            num_scalar_prefetch=0,
            grid=(B, nS2),
            in_specs=[
                pl.BlockSpec((1, Cf, St2), lambda b, s: (b, 0, s)),     # f
                pl.BlockSpec((1, Czp, St2), lambda b, s: (b, 0, s)),    # zq (+ones)
                pl.BlockSpec((1, Cf, 2), lambda b, s: (b, 0, 0)),       # scale/shift
                pl.BlockSpec((2 * Cf, Czp), lambda b, s: (0, 0)),       # fused W|bias
            ],
            out_specs=pl.BlockSpec((1, Cf, St2), lambda b, s: (b, 0, s)),
        ),
        compiler_params=pltpu.CompilerParams(
            dimension_semantics=("parallel", "parallel"),
            vmem_limit_bytes=vmem_limit_bytes),
    )(f_flat, zq_aug, scaleshift, wc)

    new_f = out.reshape(B, Cf, T, H, W)
    # kernel_size=1 causal conv caches the entire (interpolated) zq.
    new_conv_cache = {"conv_y": zq_r, "conv_b": zq_r}
    return new_f, new_conv_cache


# ---------------------------------------------------------------------------
# Pure-JAX reference (for correctness checks)
# ---------------------------------------------------------------------------
def _reference(f, zq_r, params, *, groups, eps=1e-6):
    B, Cf, T, H, W = f.shape
    G = groups
    Cg = Cf // G
    fg = f.astype(jnp.float32).reshape(B, G, Cg, T, H, W)
    mean = fg.mean(axis=(2, 3, 4, 5), keepdims=True)
    var = ((fg - mean) ** 2).mean(axis=(2, 3, 4, 5), keepdims=True)
    norm = ((fg - mean) / jnp.sqrt(var + eps)).reshape(B, Cf, T, H, W)
    norm = norm * params["gn_gamma"][None, :, None, None, None] \
                + params["gn_beta"][None, :, None, None, None]
    hi = jax.lax.Precision.HIGHEST
    conv_y = jnp.einsum("bcthw,fc->bfthw", zq_r, params["conv_y_w"], precision=hi) \
             + params["conv_y_b"][None, :, None, None, None]
    conv_b = jnp.einsum("bcthw,fc->bfthw", zq_r, params["conv_b_w"], precision=hi) \
             + params["conv_b_b"][None, :, None, None, None]
    return norm * conv_y + conv_b


if __name__ == "__main__":
    B = 2
    f_channels = 64
    zq_channels = 32
    groups = 8
    # S = 5*12*20 = 1200: NOT a multiple of 128 -> exercises the masked tail tile.
    T, H, W = 5, 12, 20
    Tz, Hz, Wz = 3, 6, 10      # odd-T split branch, integer upsample factors

    key = jax.random.PRNGKey(0)
    k1, k2, k3, k4, k5, k6, k7, k8 = jax.random.split(key, 8)

    f = jax.random.normal(k1, (B, f_channels, T, H, W), dtype=jnp.float32)
    zq = jax.random.normal(k2, (B, zq_channels, Tz, Hz, Wz), dtype=jnp.float32)

    # PyTorch-layout parameters (conv kernels squeezed from (Cf, Cz, 1, 1, 1))
    params = {
        "conv_y_w": 0.1 * jax.random.normal(k3, (f_channels, zq_channels), jnp.float32),
        "conv_y_b": 0.1 * jax.random.normal(k4, (f_channels,), jnp.float32),
        "conv_b_w": 0.1 * jax.random.normal(k5, (f_channels, zq_channels), jnp.float32),
        "conv_b_b": 0.1 * jax.random.normal(k6, (f_channels,), jnp.float32),
        "gn_gamma": 1.0 + 0.1 * jax.random.normal(k7, (f_channels,), jnp.float32),
        "gn_beta": 0.1 * jax.random.normal(k8, (f_channels,), jnp.float32),
    }

    # Small budget forces several S tiles (including a masked partial tail tile).
    new_f, new_cache = cogvideox_spatial_norm_3d(
        f, zq, params, groups=groups, vmem_budget_bytes=128 * 1024)
    new_f = jax.block_until_ready(new_f)

    ref = _reference(f, new_cache["conv_y"], params, groups=groups)
    err = float(jnp.max(jnp.abs(new_f - ref)))
    assert err < 2e-3, f"f32 max abs error too large: {err}"

    # bf16 run with the default tile budget: exercises the single-tile path and the
    # bf16 modulation branch; loose sanity bound vs the f32 reference.
    f16 = f.astype(jnp.bfloat16)
    zq16 = zq.astype(jnp.bfloat16)
    params16 = {k: v.astype(jnp.bfloat16) for k, v in params.items()}
    new_f16, _ = cogvideox_spatial_norm_3d(f16, zq16, params16, groups=groups)
    new_f16 = jax.block_until_ready(new_f16)
    err16 = float(jnp.max(jnp.abs(new_f16.astype(jnp.float32) - ref)))
    assert err16 < 0.5, f"bf16 path deviates too much from f32 reference: {err16}"

    print("KERNEL_OK")
</pallas_src>

<mosaic_0001>
module attributes {stable_mosaic.version = 11 : i64} {
  func.func @_stats_kernel(%arg0: i32, %arg1: i32, %arg2: memref<1x64x128xf32, #tpu.memory_space<vmem>>, %arg3: memref<1x64x2xf32, #tpu.memory_space<vmem>>) attributes {dimension_semantics = [#tpu.dimension_semantics<parallel>, #tpu.dimension_semantics<arbitrary>], iteration_bounds = array<i64: 2, 10>, scalar_prefetch = 0 : i64, scratch_operands = 0 : i64, tpu.core_type = #tpu.core_type<tc>, window_params = [{transform_indices = @transform_0, window_bounds = array<i64: 1, 64, 128>}, {transform_indices = @transform_1, window_bounds = array<i64: 1, 64, 2>}]} {
    %c0_i32 = arith.constant 0 : i32
    %0 = arith.cmpi eq, %arg1, %c0_i32 : i32
    %1 = arith.extui %0 : i1 to i32
    %c0_i32_0 = arith.constant 0 : i32
    %2 = arith.cmpi ne, %1, %c0_i32_0 : i32
    scf.if %2 {
      %cst_13 = arith.constant 0.000000e+00 : f32
      %25 = vector.broadcast %cst_13 : f32 to vector<1x64x2xf32>
      %c0_14 = arith.constant 0 : index
      %c0_15 = arith.constant 0 : index
      %c0_16 = arith.constant 0 : index
      %26 = vector.load %arg3[%c0_14, %c0_15, %c0_16] : memref<1x64x2xf32, #tpu.memory_space<vmem>>, vector<1x64x2xf32>
      tpu.vector_store %arg3[%c0_14, %c0_15, %c0_16], %25 {strides = array<i32>} : memref<1x64x2xf32, #tpu.memory_space<vmem>>, vector<1x64x2xf32>,
    } else {
    }
    %c0 = arith.constant 0 : index
    %c0_1 = arith.constant 0 : index
    %c0_2 = arith.constant 0 : index
    %3 = vector.load %arg2[%c0, %c0_1, %c0_2] : memref<1x64x128xf32, #tpu.memory_space<vmem>>, vector<1x64x128xf32>
    %4 = vector.shape_cast %3 : vector<1x64x128xf32> to vector<64x128xf32>
    %5 = tpu.iota {dimensions = array<i32: 1>} : vector<64x128xi32>
    %c128_i32 = arith.constant 128 : i32
    %6 = arith.muli %arg1, %c128_i32 : i32
    %7 = vector.broadcast %6 : i32 to vector<64x128xi32>
    %8 = arith.addi %7, %5 : vector<64x128xi32>
    %c1200_i32 = arith.constant 1200 : i32
    %9 = vector.broadcast %c1200_i32 : i32 to vector<64x128xi32>
    %10 = arith.cmpi slt, %8, %9 : vector<64x128xi32>
    %cst = arith.constant 0.000000e+00 : f32
    %11 = vector.broadcast %cst : f32 to vector<64x128xf32>
    %12 = arith.select %10, %4, %11 : vector<64x128xi1>, vector<64x128xf32>
    %cst_3 = arith.constant 1.000000e+00 : f32
    %13 = vector.broadcast %cst_3 : f32 to vector<128x1xf32>
    %cst_4 = arith.constant dense<0.000000e+00> : vector<64x1xf32>
    %14 = tpu.matmul %12, %13, %cst_4 {dimension_numbers = #tpu.dot_dimension_numbers<[1], [0], [0], [1], [0, 0, 1, 1], [], []>, precision = #tpu.contract_precision<fp32>} : vector<64x128xf32>, vector<128x1xf32>, vector<64x1xf32> -> vector<64x1xf32>
    %15 = arith.mulf %12, %12 : vector<64x128xf32>
    %cst_5 = arith.constant 1.000000e+00 : f32
    %16 = vector.broadcast %cst_5 : f32 to vector<128x1xf32>
    %cst_6 = arith.constant dense<0.000000e+00> : vector<64x1xf32>
    %17 = tpu.matmul %15, %16, %cst_6 {dimension_numbers = #tpu.dot_dimension_numbers<[1], [0], [0], [1], [0, 0, 1, 1], [], []>, precision = #tpu.contract_precision<fp32>} : vector<64x128xf32>, vector<128x1xf32>, vector<64x1xf32> -> vector<64x1xf32>
    %c0_7 = arith.constant 0 : index
    %c0_8 = arith.constant 0 : index
    %c0_9 = arith.constant 0 : index
    %18 = vector.load %arg3[%c0_7, %c0_8, %c0_9] : memref<1x64x2xf32, #tpu.memory_space<vmem>>, vector<1x64x2xf32>
    %19 = vector.shape_cast %18 : vector<1x64x2xf32> to vector<64x2xf32>
    %20 = tpu.concatenate %14, %17 in 1 : vector<64x1xf32>, vector<64x1xf32> -> vector<64x2xf32>
    %21 = arith.addf %19, %20 : vector<64x2xf32>
    %c0_10 = arith.constant 0 : index
    %c0_11 = arith.constant 0 : index
    %c0_12 = arith.constant 0 : index
    %22 = vector.load %arg3[%c0_10, %c0_11, %c0_12] : memref<1x64x2xf32, #tpu.memory_space<vmem>>, vector<1x64x2xf32>
    %23 = vector.shape_cast %22 : vector<1x64x2xf32> to vector<64x2xf32>
    %24 = vector.shape_cast %21 : vector<64x2xf32> to vector<1x64x2xf32>
    tpu.vector_store %arg3[%c0_10, %c0_11, %c0_12], %24 {strides = array<i32>} : memref<1x64x2xf32, #tpu.memory_space<vmem>>, vector<1x64x2xf32>,
    return
  }
  func.func @transform_0(%arg0: i32, %arg1: i32) -> (i32, i32, i32) {
    %c0_i32 = arith.constant 0 : i32
    %c0_i32_0 = arith.constant 0 : i32
    return %arg0, %c0_i32, %arg1 : i32, i32, i32
  }
  func.func @transform_1(%arg0: i32, %arg1: i32) -> (i32, i32, i32) {
    %c0_i32 = arith.constant 0 : i32
    %c0_i32_0 = arith.constant 0 : i32
    %c0_i32_1 = arith.constant 0 : i32
    return %arg0, %c0_i32, %c0_i32_0 : i32, i32, i32
  }
}

</mosaic_0001>

<llo_original>
// kernel: tpu_custom_call.1
$region0: #{tpu_custom_call.1}
  #allocation0 [shape = 'u32[]', space=smem, size = 0x4, offset = 0x4, fixed_abs, tag = 'smem constant byte address 0x4 - core index']
  #allocation1 [shape = 'u32[72,128]{1,0:T(1,128)}', space=vmem, size = 0x9000, scoped, tag = 'internal scratch']
  %s0 = inlined_call_operand.hbm [shape: f32[2,64,1200], index: 0, kind: input, shape index: {}]
  %s1 = inlined_call_operand.vmem [shape: f32[2,64,2], index: 1, kind: output, shape index: {}]
  %s2 = sld [smem:[#allocation0]]
  $region45: #{tpu_custom_call.1} parent=0
    _
  %s4 = ssub.s32 1, %s2
  %s5 = scalar_select 0, %s4, %s2
  $region1: #{tpu_custom_call.1} parent=0
    #allocation2 [shape = 'u8[65536]{0}', space=vmem, size = 0x10000, scoped, tag = 'input window, operand 0']
    #allocation3 [shape = 's32[2]{0}', space=sflag, size = 0x8, scoped, tag = 'scoped memory for tpu_custom_call.1']
    %6 = vsyncpa [#allocation3], 0
    %s7 = scalar_lea.sflag [#allocation3], 1
    %8 = vsyncpa %s7, 0
    loop: start=0, step=1, limit=22
    $region2: #{tpu_custom_call.1} parent=1 // loop_pre_header
      _
    $region3: #{tpu_custom_call.1} parent=1 // loop_header
      %s10 = sphi 0, %s14
      %p11 = scmp.ge.s32.totalorder %s10, 22
      %s17 = sphi 0, %s29
      %s18 = sphi 0, %s25
      %s19 = sphi 0, %s17
      %s20 = sphi 0, %s18
      %s21 = sphi 0, %s19
      %s22 = sphi 0, %s20
      %s34 = sphi 0, %s36
      %s37 = sphi 0, %s34
      %s38 = sphi 0, %s37
      %s54 = sphi 0, %s38
      %s60 = sphi 0, %s62
      %s63 = sphi 0, %s60
      %s64 = sphi 0, %s63
      %s80 = sphi 0, %s64
    $region4: #{tpu_custom_call.1} parent=1 // loop_header_branch
      %13 = sbr.rel (%p11) target = $region8
    $region5: #{tpu_custom_call.1} parent=1 // loop_body
      %s15 = ssub.s32 %s10, 1
      %s16 = ssub.s32 %s10, 2
      %s23 = sadd.s32 1, %s18
      %p24 = scmp.ge.s32.totalorder %s23, 10
      %s25 = scalar_select %p24, 0, %s23
      %s26 = sadd.s32 1, %s17
      %s27 = scalar_select %p24, %s26, %s17
      %p28 = scmp.ge.s32.totalorder %s27, 2
      %s29 = scalar_select %p28, 0, %s27
      %s30 = ssub.s32 %s17, %s29
      %s31 = ssub.s32 %s18, %s25
      %s32 = sor.u32 %s30, %s31
      %p33 = scmp.eq.s32.totalorder %s32, 0
      %s35 = sadd.s32 %s34, 1
      %s36 = scalar_select %p33, %s34, %s35
      %p39 = pneg %p33
      %p40 = scmp.eq.s32.totalorder %s10, 19
      %p41 = por %p39, %p40
      %p42 = scmp.ne.s32.totalorder %s34, %s37
      %p43 = scmp.eq.s32.totalorder %s10, 0
      %p44 = por %p42, %p43
      %p45 = scmp.ne.s32.totalorder %s34, %s37
      %p46 = scmp.eq.s32.totalorder %s15, 19
      %p47 = por %p45, %p46
      %p48 = scmp.ne.s32.totalorder %s37, %s38
      %p49 = scmp.eq.s32.totalorder %s15, 0
      %p50 = por %p48, %p49
      %p51 = scmp.ne.s32.totalorder %s37, %s38
      %p52 = scmp.eq.s32.totalorder %s16, 19
      %p53 = por %p51, %p52
      %p55 = scmp.ne.s32.totalorder %s38, %s54
      %p56 = scmp.eq.s32.totalorder %s16, 0
      %p57 = por %p55, %p56
      %s58 = ssub.s32 %s17, %s29
      %p59 = scmp.eq.s32.totalorder %s58, 0
      %s61 = sadd.s32 %s60, 1
      %s62 = scalar_select %p59, %s60, %s61
      %p65 = pneg %p59
      %p66 = scmp.eq.s32.totalorder %s10, 19
      %p67 = por %p65, %p66
      %p68 = scmp.ne.s32.totalorder %s60, %s63
      %p69 = scmp.eq.s32.totalorder %s10, 0
      %p70 = por %p68, %p69
      %p71 = scmp.ne.s32.totalorder %s60, %s63
      %p72 = scmp.eq.s32.totalorder %s15, 19
      %p73 = por %p71, %p72
      %p74 = scmp.ne.s32.totalorder %s63, %s64
      %p75 = scmp.eq.s32.totalorder %s15, 0
      %p76 = por %p74, %p75
      %p77 = scmp.ne.s32.totalorder %s63, %s64
      %p78 = scmp.eq.s32.totalorder %s16, 19
      %p79 = por %p77, %p78
      %p81 = scmp.ne.s32.totalorder %s64, %s80
      %p82 = scmp.eq.s32.totalorder %s16, 0
      %p83 = por %p81, %p82
      %p84 = scmp.le.s32.totalorder 1, %s10
      %p85 = scmp.lt.s32.totalorder %s10, 21
      %p86 = pnand %p84, %p85
      %p87 = pneg %p86
      // Predicated region
      $region9: #{tpu_custom_call.1} parent=5 // pred_check
        _
      $region10: #{tpu_custom_call.1} parent=5 // pred_check_branch
        %89 = sbr.rel (%p86) target = $region12
      $region11: #{tpu_custom_call.1} parent=5 // pred_region
        %s90 = ssub.s32 %s10, 1
      $region12: #{tpu_custom_call.1} parent=5 // pred_fallthru
        _
      %p91 = scmp.lt.s32.totalorder %s10, 20
      // Predicated region
      $region13: #{tpu_custom_call.1} parent=5 // pred_check
        %p92 = pneg %p91
      $region14: #{tpu_custom_call.1} parent=5 // pred_check_branch
        %94 = sbr.rel (%p92) target = $region16
      $region15: #{tpu_custom_call.1} parent=5 // pred_region
        // Predicated region
        $region17: #{tpu_custom_call.1} parent=15 // pred_check
          %p95 = pneg %p44
        $region18: #{tpu_custom_call.1} parent=15 // pred_check_branch
          %97 = sbr.rel (%p95) target = $region20
        $region19: #{tpu_custom_call.1} parent=15 // pred_region
          %s98 = sand.u32 %s34, 1
          %s99 = scalar_lea.sflag [#allocation3], %s98
          %s100 = sand.u32 %s34, 1
          %s101 = smul.addr %s100, 64
          %s102 = scalar_lea.vmem [#allocation2], %s101
          %104 = vsyncadd %s99, 0
          %s105 = smul.addr %s17, 80
          %s106 = sadd.s32 %s18, %s105
          %s107 = smul.addr %s106, 8
          %s108 = scalar_lea.hbm %s0, %s107
          %s109 = sshll.u32 %s108, 4
          %s110 = int_to_ptr.hbm [resolvable:$true] %s109
          %s111 = sshll.u32 %s102, 4
          %s112 = int_to_ptr.vmem [resolvable:$true] %s111
          %117 = dma.hbm_to_vmem [thread:$0]  %s110, 1024, %s112, %s99, 1280, 128, 8
        $region20: #{tpu_custom_call.1} parent=15 // pred_fallthru
          _
      $region16: #{tpu_custom_call.1} parent=5 // pred_fallthru
        _
      %p118 = scmp.le.s32.totalorder 1, %s10
      %p119 = scmp.lt.s32.totalorder %s10, 21
      %p120 = pnand %p118, %p119
      %p121 = pneg %p120
      // Predicated region
      $region21: #{tpu_custom_call.1} parent=5 // pred_check
        _
      $region22: #{tpu_custom_call.1} parent=5 // pred_check_branch
        %123 = sbr.rel (%p120) target = $region24
      $region23: #{tpu_custom_call.1} parent=5 // pred_region
        %s124 = ssub.s32 %s10, 1
        %s125 = sand.u32 %s37, 1
        %s126 = scalar_lea.sflag [#allocation3], %s125
        %s127 = sand.u32 %s37, 1
        %s128 = smul.addr %s127, 64
        %s129 = scalar_lea.vmem [#allocation2], %s128
        // Predicated region
        $region25: #{tpu_custom_call.1} parent=23 // pred_check
          %p130 = pneg %p50
        $region26: #{tpu_custom_call.1} parent=23 // pred_check_branch
          %132 = sbr.rel (%p130) target = $region28
        $region27: #{tpu_custom_call.1} parent=23 // pred_region
          %134 = dma.done %s126, 1024
        $region28: #{tpu_custom_call.1} parent=23 // pred_fallthru
          _
        %s135 = sand.u32 %s37, 1
        %s136 = scalar_lea.sflag [#allocation3], %s135
        %s137 = sand.u32 %s37, 1
        %s138 = smul.addr %s137, 64
        %s139 = scalar_lea.vmem [#allocation2], %s138
        %p140 = pneg %p50
        %p141 = pneg %p47
        %p142 = pneg %p76
        %p143 = pneg %p73
        %p144 = scmp.lt.s32.totalorder %s19, 1
        %s145 = scalar_select %p144, %s19, 1
        %s146 = smul.addr %s145, 8
        %s147 = smul.addr %s146, 8
        %s148 = scalar_lea.vmem %s1, %s147
        %p149 = scmp.lt.s32.totalorder %s19, 1
        %s150 = scalar_select %p149, %s19, 1
        %s151 = smul.addr %s150, 8
        %s152 = smul.addr %s151, 8
        %s153 = scalar_lea.vmem %s1, %s152
        %p154 = scmp.eq.s32.totalorder %s20, 0
        // Predicated region
        $region29: #{tpu_custom_call.1} parent=23 // pred_check
          %p155 = pneg %p154
        $region30: #{tpu_custom_call.1} parent=23 // pred_check_branch
          %157 = sbr.rel (%p155) target = $region32
        $region31: #{tpu_custom_call.1} parent=23 // pred_region
          %vm158 = vcmask 15360
          %159 = vst.msk [vmem:[%s153] sm:$0xff] %vm158, 0.0
          %160 = vst.msk [vmem:[%s153 + $0x8] sm:$0xff] %vm158, 0.0
          %161 = vst.msk [vmem:[%s153 + $0x10] sm:$0xff] %vm158, 0.0
          %162 = vst.msk [vmem:[%s153 + $0x18] sm:$0xff] %vm158, 0.0
          %163 = vst.msk [vmem:[%s153 + $0x20] sm:$0xff] %vm158, 0.0
          %164 = vst.msk [vmem:[%s153 + $0x28] sm:$0xff] %vm158, 0.0
          %165 = vst.msk [vmem:[%s153 + $0x30] sm:$0xff] %vm158, 0.0
          %166 = vst.msk [vmem:[%s153 + $0x38] sm:$0xff] %vm158, 0.0
        $region32: #{tpu_custom_call.1} parent=23 // pred_fallthru
          _
        %v167 = vld [vmem:[%s129] sm:$0xff]
        %v168 = vld [vmem:[%s129 + $0x8] sm:$0xff]
        %v169 = vld [vmem:[%s129 + $0x10] sm:$0xff]
        %v170 = vld [vmem:[%s129 + $0x18] sm:$0xff]
        %v171 = vld [vmem:[%s129 + $0x20] sm:$0xff]
        %v172 = vld [vmem:[%s129 + $0x28] sm:$0xff]
        %v173 = vld [vmem:[%s129 + $0x30] sm:$0xff]
        %v174 = vld [vmem:[%s129 + $0x38] sm:$0xff]
        %v175 = vlaneseq
        %v176 = vand.u32 %v175, 127
        %s177 = smul.u32 %s20, 128
        %v178 = vstv %s177
        %v179 = vadd.s32 %v178, %v176
        %vm180 = vcmp.lt.s32.totalorder %v179, 1200
        %v181 = vsel %vm180, %v167, 0.0
        %v182 = vsel %vm180, %v168, 0.0
        %v183 = vsel %vm180, %v169, 0.0
        %v184 = vsel %vm180, %v170, 0.0
        %v185 = vsel %vm180, %v171, 0.0
        %v186 = vsel %vm180, %v172, 0.0
        %v187 = vsel %vm180, %v173, 0.0
        %v188 = vsel %vm180, %v174, 0.0
        %189 = vmatpush.msra.mxu0 1.0
        %190 = vmatpush.msra.mxu0 1.0
        %191 = vmatpush.msra.mxu0 1.0
        %192 = vmatpush.msra.mxu0 1.0
        %193 = vmatpush.msra.mxu0 1.0
        %194 = vmatpush.msra.mxu0 1.0
        %195 = vmatpush.msra.mxu0 1.0
        %196 = vmatpush.msra.mxu0 1.0
        %197 = vmatpush.msra.mxu0 1.0
        %198 = vmatpush.msra.mxu0 1.0
        %199 = vmatpush.msra.mxu0 1.0
        %200 = vmatpush.msra.mxu0 1.0
        %201 = vmatpush.msra.mxu0 1.0
        %202 = vmatpush.msra.mxu0 1.0
        %203 = vmatpush.msra.mxu0 1.0
        %204 = vmatpush.msra.mxu0 1.0
        %v205 = vand.u32 %v181, 4294901760
        %v206 = vsub.f32 %v181, %v205
        %v207 = vand.u32 %v206, 4294901760
        %v208 = vsub.f32 %v206, %v207
        %v209 = vand.u32 %v208, 4294901760
        %210 = vmatmul.f32.gmra.mxu0 %v209
        %v211 = vpop.f32.mrf.mxu0
        %v212 = vadd.f32 0.0, %v211
        %v213 = vand.u32 %v182, 4294901760
        %v214 = vsub.f32 %v182, %v213
        %v215 = vand.u32 %v214, 4294901760
        %v216 = vsub.f32 %v214, %v215
        %v217 = vand.u32 %v216, 4294901760
        %218 = vmatmul.f32.gmra.mxu0 %v217
        %v219 = vpop.f32.mrf.mxu0
        %v220 = vadd.f32 0.0, %v219
        %v221 = vand.u32 %v183, 4294901760
        %v222 = vsub.f32 %v183, %v221
        %v223 = vand.u32 %v222, 4294901760
        %v224 = vsub.f32 %v222, %v223
        %v225 = vand.u32 %v224, 4294901760
        %226 = vmatmul.f32.gmra.mxu0 %v225
        %v227 = vpop.f32.mrf.mxu0
        %v228 = vadd.f32 0.0, %v227
        %v229 = vand.u32 %v184, 4294901760
        %v230 = vsub.f32 %v184, %v229
        %v231 = vand.u32 %v230, 4294901760
        %v232 = vsub.f32 %v230, %v231
        %v233 = vand.u32 %v232, 4294901760
        %234 = vmatmul.f32.gmra.mxu0 %v233
        %v235 = vpop.f32.mrf.mxu0
        %v236 = vadd.f32 0.0, %v235
        %v237 = vand.u32 %v185, 4294901760
        %v238 = vsub.f32 %v185, %v237
        %v239 = vand.u32 %v238, 4294901760
        %v240 = vsub.f32 %v238, %v239
        %v241 = vand.u32 %v240, 4294901760
        %242 = vmatmul.f32.gmra.mxu0 %v241
        %v243 = vpop.f32.mrf.mxu0
        %v244 = vadd.f32 0.0, %v243
        %v245 = vand.u32 %v186, 4294901760
        %v246 = vsub.f32 %v186, %v245
        %v247 = vand.u32 %v246, 4294901760
        %v248 = vsub.f32 %v246, %v247
        %v249 = vand.u32 %v248, 4294901760
        %250 = vmatmul.f32.gmra.mxu0 %v249
        %v251 = vpop.f32.mrf.mxu0
        %v252 = vadd.f32 0.0, %v251
        %v253 = vand.u32 %v187, 4294901760
        %v254 = vsub.f32 %v187, %v253
        %v255 = vand.u32 %v254, 4294901760
        %v256 = vsub.f32 %v254, %v255
        %v257 = vand.u32 %v256, 4294901760
        %258 = vmatmul.f32.gmra.mxu0 %v257
        %v259 = vpop.f32.mrf.mxu0
        %v260 = vadd.f32 0.0, %v259
        %v261 = vand.u32 %v188, 4294901760
        %v262 = vsub.f32 %v188, %v261
        %v263 = vand.u32 %v262, 4294901760
        %v264 = vsub.f32 %v262, %v263
        %v265 = vand.u32 %v264, 4294901760
        %266 = vmatmul.f32.gmra.mxu0 %v265
        %v267 = vpop.f32.mrf.mxu0
        %v268 = vadd.f32 0.0, %v267
        %269 = vdwg.mxu0
        %270 = vmatpush.msra.mxu0 0.0
        %271 = vmatpush.msra.mxu0 0.0
        %272 = vmatpush.msra.mxu0 0.0
        %273 = vmatpush.msra.mxu0 0.0
        %274 = vmatpush.msra.mxu0 0.0
        %275 = vmatpush.msra.mxu0 0.0
        %276 = vmatpush.msra.mxu0 0.0
        %277 = vmatpush.msra.mxu0 0.0
        %278 = vmatpush.msra.mxu0 0.0
        %279 = vmatpush.msra.mxu0 0.0
        %280 = vmatpush.msra.mxu0 0.0
        %281 = vmatpush.msra.mxu0 0.0
        %282 = vmatpush.msra.mxu0 0.0
        %283 = vmatpush.msra.mxu0 0.0
        %284 = vmatpush.msra.mxu0 0.0
        %285 = vmatpush.msra.mxu0 0.0
        %v286 = vand.u32 %v181, 4294901760
        %287 = vmatmul.f32.gmra.mxu0 %v286
        %v288 = vpop.f32.mrf.mxu0
        %v289 = vadd.f32 %v212, %v288
        %v290 = vand.u32 %v182, 4294901760
        %291 = vmatmul.f32.gmra.mxu0 %v290
        %v292 = vpop.f32.mrf.mxu0
        %v293 = vadd.f32 %v220, %v292
        %v294 = vand.u32 %v183, 4294901760
        %295 = vmatmul.f32.gmra.mxu0 %v294
        %v296 = vpop.f32.mrf.mxu0
        %v297 = vadd.f32 %v228, %v296
        %v298 = vand.u32 %v184, 4294901760
        %299 = vmatmul.f32.gmra.mxu0 %v298
        %v300 = vpop.f32.mrf.mxu0
        %v301 = vadd.f32 %v236, %v300
        %v302 = vand.u32 %v185, 4294901760
        %303 = vmatmul.f32.gmra.mxu0 %v302
        %v304 = vpop.f32.mrf.mxu0
        %v305 = vadd.f32 %v244, %v304
        %v306 = vand.u32 %v186, 4294901760
        %307 = vmatmul.f32.gmra.mxu0 %v306
        %v308 = vpop.f32.mrf.mxu0
        %v309 = vadd.f32 %v252, %v308
        %v310 = vand.u32 %v187, 4294901760
        %311 = vmatmul.f32.gmra.mxu0 %v310
        %v312 = vpop.f32.mrf.mxu0
        %v313 = vadd.f32 %v260, %v312
        %v314 = vand.u32 %v188, 4294901760
        %315 = vmatmul.f32.gmra.mxu0 %v314
        %v316 = vpop.f32.mrf.mxu0
        %v317 = vadd.f32 %v268, %v316
        %318 = vdwg.mxu0
        %319 = vmatpush.msra.mxu0 0.0
        %320 = vmatpush.msra.mxu0 0.0
        %321 = vmatpush.msra.mxu0 0.0
        %322 = vmatpush.msra.mxu0 0.0
        %323 = vmatpush.msra.mxu0 0.0
        %324 = vmatpush.msra.mxu0 0.0
        %325 = vmatpush.msra.mxu0 0.0
        %326 = vmatpush.msra.mxu0 0.0
        %327 = vmatpush.msra.mxu0 0.0
        %328 = vmatpush.msra.mxu0 0.0
        %329 = vmatpush.msra.mxu0 0.0
        %330 = vmatpush.msra.mxu0 0.0
        %331 = vmatpush.msra.mxu0 0.0
        %332 = vmatpush.msra.mxu0 0.0
        %333 = vmatpush.msra.mxu0 0.0
        %334 = vmatpush.msra.mxu0 0.0
        %v335 = vand.u32 %v181, 4294901760
        %v336 = vsub.f32 %v181, %v335
        %337 = vmatmul.f32.gmra.mxu0 %v336
        %v338 = vpop.f32.mrf.mxu0
        %v339 = vadd.f32 %v289, %v338
        %v340 = vand.u32 %v182, 4294901760
        %v341 = vsub.f32 %v182, %v340
        %342 = vmatmul.f32.gmra.mxu0 %v341
        %v343 = vpop.f32.mrf.mxu0
        %v344 = vadd.f32 %v293, %v343
        %v345 = vand.u32 %v183, 4294901760
        %v346 = vsub.f32 %v183, %v345
        %347 = vmatmul.f32.gmra.mxu0 %v346
        %v348 = vpop.f32.mrf.mxu0
        %v349 = vadd.f32 %v297, %v348
        %v350 = vand.u32 %v184, 4294901760
        %v351 = vsub.f32 %v184, %v350
        %352 = vmatmul.f32.gmra.mxu0 %v351
        %v353 = vpop.f32.mrf.mxu0
        %v354 = vadd.f32 %v301, %v353
        %v355 = vand.u32 %v185, 4294901760
        %v356 = vsub.f32 %v185, %v355
        %357 = vmatmul.f32.gmra.mxu0 %v356
        %v358 = vpop.f32.mrf.mxu0
        %v359 = vadd.f32 %v305, %v358
        %v360 = vand.u32 %v186, 4294901760
        %v361 = vsub.f32 %v186, %v360
        %362 = vmatmul.f32.gmra.mxu0 %v361
        %v363 = vpop.f32.mrf.mxu0
        %v364 = vadd.f32 %v309, %v363
        %v365 = vand.u32 %v187, 4294901760
        %v366 = vsub.f32 %v187, %v365
        %367 = vmatmul.f32.gmra.mxu0 %v366
        %v368 = vpop.f32.mrf.mxu0
        %v369 = vadd.f32 %v313, %v368
        %v370 = vand.u32 %v188, 4294901760
        %v371 = vsub.f32 %v188, %v370
        %372 = vmatmul.f32.gmra.mxu0 %v371
        %v373 = vpop.f32.mrf.mxu0
        %v374 = vadd.f32 %v317, %v373
        %375 = vdwg.mxu0
        %376 = vmatpush.msra.mxu0 1.0
        %377 = vmatpush.msra.mxu0 1.0
        %378 = vmatpush.msra.mxu0 1.0
        %379 = vmatpush.msra.mxu0 1.0
        %380 = vmatpush.msra.mxu0 1.0
        %381 = vmatpush.msra.mxu0 1.0
        %382 = vmatpush.msra.mxu0 1.0
        %383 = vmatpush.msra.mxu0 1.0
        %384 = vmatpush.msra.mxu0 1.0
        %385 = vmatpush.msra.mxu0 1.0
        %386 = vmatpush.msra.mxu0 1.0
        %387 = vmatpush.msra.mxu0 1.0
        %388 = vmatpush.msra.mxu0 1.0
        %389 = vmatpush.msra.mxu0 1.0
        %390 = vmatpush.msra.mxu0 1.0
        %391 = vmatpush.msra.mxu0 1.0
        %v392 = vand.u32 %v181, 4294901760
        %v393 = vsub.f32 %v181, %v392
        %v394 = vand.u32 %v393, 4294901760
        %395 = vmatmul.f32.gmra.mxu0 %v394
        %v396 = vpop.f32.mrf.mxu0
        %v397 = vadd.f32 %v339, %v396
        %v398 = vand.u32 %v182, 4294901760
        %v399 = vsub.f32 %v182, %v398
        %v400 = vand.u32 %v399, 4294901760
        %401 = vmatmul.f32.gmra.mxu0 %v400
        %v402 = vpop.f32.mrf.mxu0
        %v403 = vadd.f32 %v344, %v402
        %v404 = vand.u32 %v183, 4294901760
        %v405 = vsub.f32 %v183, %v404
        %v406 = vand.u32 %v405, 4294901760
        %407 = vmatmul.f32.gmra.mxu0 %v406
        %v408 = vpop.f32.mrf.mxu0
        %v409 = vadd.f32 %v349, %v408
        %v410 = vand.u32 %v184, 4294901760
        %v411 = vsub.f32 %v184, %v410
        %v412 = vand.u32 %v411, 4294901760
        %413 = vmatmul.f32.gmra.mxu0 %v412
        %v414 = vpop.f32.mrf.mxu0
        %v415 = vadd.f32 %v354, %v414
        %v416 = vand.u32 %v185, 4294901760
        %v417 = vsub.f32 %v185, %v416
        %v418 = vand.u32 %v417, 4294901760
        %419 = vmatmul.f32.gmra.mxu0 %v418
        %v420 = vpop.f32.mrf.mxu0
        %v421 = vadd.f32 %v359, %v420
        %v422 = vand.u32 %v186, 4294901760
        %v423 = vsub.f32 %v186, %v422
        %v424 = vand.u32 %v423, 4294901760
        %425 = vmatmul.f32.gmra.mxu0 %v424
        %v426 = vpop.f32.mrf.mxu0
        %v427 = vadd.f32 %v364, %v426
        %v428 = vand.u32 %v187, 4294901760
        %v429 = vsub.f32 %v187, %v428
        %v430 = vand.u32 %v429, 4294901760
        %431 = vmatmul.f32.gmra.mxu0 %v430
        %v432 = vpop.f32.mrf.mxu0
        %v433 = vadd.f32 %v369, %v432
        %v434 = vand.u32 %v188, 4294901760
        %v435 = vsub.f32 %v188, %v434
        %v436 = vand.u32 %v435, 4294901760
        %437 = vmatmul.f32.gmra.mxu0 %v436
        %v438 = vpop.f32.mrf.mxu0
        %v439 = vadd.f32 %v374, %v438
        %440 = vdwg.mxu0
        %441 = vmatpush.msra.mxu0 0.0
        %442 = vmatpush.msra.mxu0 0.0
        %443 = vmatpush.msra.mxu0 0.0
        %444 = vmatpush.msra.mxu0 0.0
        %445 = vmatpush.msra.mxu0 0.0
        %446 = vmatpush.msra.mxu0 0.0
        %447 = vmatpush.msra.mxu0 0.0
        %448 = vmatpush.msra.mxu0 0.0
        %449 = vmatpush.msra.mxu0 0.0
        %450 = vmatpush.msra.mxu0 0.0
        %451 = vmatpush.msra.mxu0 0.0
        %452 = vmatpush.msra.mxu0 0.0
        %453 = vmatpush.msra.mxu0 0.0
        %454 = vmatpush.msra.mxu0 0.0
        %455 = vmatpush.msra.mxu0 0.0
        %456 = vmatpush.msra.mxu0 0.0
        %v457 = vand.u32 %v181, 4294901760
        %458 = vmatmul.f32.gmra.mxu0 %v457
        %v459 = vpop.f32.mrf.mxu0
        %v460 = vadd.f32 %v397, %v459
        %v461 = vand.u32 %v182, 4294901760
        %462 = vmatmul.f32.gmra.mxu0 %v461
        %v463 = vpop.f32.mrf.mxu0
        %v464 = vadd.f32 %v403, %v463
        %v465 = vand.u32 %v183, 4294901760
        %466 = vmatmul.f32.gmra.mxu0 %v465
        %v467 = vpop.f32.mrf.mxu0
        %v468 = vadd.f32 %v409, %v467
        %v469 = vand.u32 %v184, 4294901760
        %470 = vmatmul.f32.gmra.mxu0 %v469
        %v471 = vpop.f32.mrf.mxu0
        %v472 = vadd.f32 %v415, %v471
        %v473 = vand.u32 %v185, 4294901760
        %474 = vmatmul.f32.gmra.mxu0 %v473
        %v475 = vpop.f32.mrf.mxu0
        %v476 = vadd.f32 %v421, %v475
        %v477 = vand.u32 %v186, 4294901760
        %478 = vmatmul.f32.gmra.mxu0 %v477
        %v479 = vpop.f32.mrf.mxu0
        %v480 = vadd.f32 %v427, %v479
        %v481 = vand.u32 %v187, 4294901760
        %482 = vmatmul.f32.gmra.mxu0 %v481
        %v483 = vpop.f32.mrf.mxu0
        %v484 = vadd.f32 %v433, %v483
        %v485 = vand.u32 %v188, 4294901760
        %486 = vmatmul.f32.gmra.mxu0 %v485
        %v487 = vpop.f32.mrf.mxu0
        %v488 = vadd.f32 %v439, %v487
        %489 = vdwg.mxu0
        %490 = vmatpush.msra.mxu0 1.0
        %491 = vmatpush.msra.mxu0 1.0
        %492 = vmatpush.msra.mxu0 1.0
        %493 = vmatpush.msra.mxu0 1.0
        %494 = vmatpush.msra.mxu0 1.0
        %495 = vmatpush.msra.mxu0 1.0
        %496 = vmatpush.msra.mxu0 1.0
        %497 = vmatpush.msra.mxu0 1.0
        %498 = vmatpush.msra.mxu0 1.0
        %499 = vmatpush.msra.mxu0 1.0
        %500 = vmatpush.msra.mxu0 1.0
        %501 = vmatpush.msra.mxu0 1.0
        %502 = vmatpush.msra.mxu0 1.0
        %503 = vmatpush.msra.mxu0 1.0
        %504 = vmatpush.msra.mxu0 1.0
        %505 = vmatpush.msra.mxu0 1.0
        %v506 = vand.u32 %v181, 4294901760
        %507 = vmatmul.f32.gmra.mxu0 %v506
        %v508 = vpop.f32.mrf.mxu0
        %v509 = vadd.f32 %v460, %v508
        %v510 = vand.u32 %v182, 4294901760
        %511 = vmatmul.f32.gmra.mxu0 %v510
        %v512 = vpop.f32.mrf.mxu0
        %v513 = vadd.f32 %v464, %v512
        %v514 = vand.u32 %v183, 4294901760
        %515 = vmatmul.f32.gmra.mxu0 %v514
        %v516 = vpop.f32.mrf.mxu0
        %v517 = vadd.f32 %v468, %v516
        %v518 = vand.u32 %v184, 4294901760
        %519 = vmatmul.f32.gmra.mxu0 %v518
        %v520 = vpop.f32.mrf.mxu0
        %v521 = vadd.f32 %v472, %v520
        %v522 = vand.u32 %v185, 4294901760
        %523 = vmatmul.f32.gmra.mxu0 %v522
        %v524 = vpop.f32.mrf.mxu0
        %v525 = vadd.f32 %v476, %v524
        %v526 = vand.u32 %v186, 4294901760
        %527 = vmatmul.f32.gmra.mxu0 %v526
        %v528 = vpop.f32.mrf.mxu0
        %v529 = vadd.f32 %v480, %v528
        %v530 = vand.u32 %v187, 4294901760
        %531 = vmatmul.f32.gmra.mxu0 %v530
        %v532 = vpop.f32.mrf.mxu0
        %v533 = vadd.f32 %v484, %v532
        %v534 = vand.u32 %v188, 4294901760
        %535 = vmatmul.f32.gmra.mxu0 %v534
        %v536 = vpop.f32.mrf.mxu0
        %v537 = vadd.f32 %v488, %v536
        %538 = vdwg.mxu0
        %v539 = vmul.f32 %v181, %v181
        %v540 = vmul.f32 %v182, %v182
        %v541 = vmul.f32 %v183, %v183
        %v542 = vmul.f32 %v184, %v184
        %v543 = vmul.f32 %v185, %v185
        %v544 = vmul.f32 %v186, %v186
        %v545 = vmul.f32 %v187, %v187
        %v546 = vmul.f32 %v188, %v188
        %547 = vmatpush.msra.mxu0 1.0
        %548 = vmatpush.msra.mxu0 1.0
        %549 = vmatpush.msra.mxu0 1.0
        %550 = vmatpush.msra.mxu0 1.0
        %551 = vmatpush.msra.mxu0 1.0
        %552 = vmatpush.msra.mxu0 1.0
        %553 = vmatpush.msra.mxu0 1.0
        %554 = vmatpush.msra.mxu0 1.0
        %555 = vmatpush.msra.mxu0 1.0
        %556 = vmatpush.msra.mxu0 1.0
        %557 = vmatpush.msra.mxu0 1.0
        %558 = vmatpush.msra.mxu0 1.0
        %559 = vmatpush.msra.mxu0 1.0
        %560 = vmatpush.msra.mxu0 1.0
        %561 = vmatpush.msra.mxu0 1.0
        %562 = vmatpush.msra.mxu0 1.0
        %v563 = vand.u32 %v539, 4294901760
        %v564 = vsub.f32 %v539, %v563
        %v565 = vand.u32 %v564, 4294901760
        %v566 = vsub.f32 %v564, %v565
        %v567 = vand.u32 %v566, 4294901760
        %568 = vmatmul.f32.gmra.mxu0 %v567
        %v569 = vpop.f32.mrf.mxu0
        %v570 = vadd.f32 0.0, %v569
        %v571 = vand.u32 %v540, 4294901760
        %v572 = vsub.f32 %v540, %v571
        %v573 = vand.u32 %v572, 4294901760
        %v574 = vsub.f32 %v572, %v573
        %v575 = vand.u32 %v574, 4294901760
        %576 = vmatmul.f32.gmra.mxu0 %v575
        %v577 = vpop.f32.mrf.mxu0
        %v578 = vadd.f32 0.0, %v577
        %v579 = vand.u32 %v541, 4294901760
        %v580 = vsub.f32 %v541, %v579
        %v581 = vand.u32 %v580, 4294901760
        %v582 = vsub.f32 %v580, %v581
        %v583 = vand.u32 %v582, 4294901760
        %584 = vmatmul.f32.gmra.mxu0 %v583
        %v585 = vpop.f32.mrf.mxu0
        %v586 = vadd.f32 0.0, %v585
        %v587 = vand.u32 %v542, 4294901760
        %v588 = vsub.f32 %v542, %v587
        %v589 = vand.u32 %v588, 4294901760
        %v590 = vsub.f32 %v588, %v589
        %v591 = vand.u32 %v590, 4294901760
        %592 = vmatmul.f32.gmra.mxu0 %v591
        %v593 = vpop.f32.mrf.mxu0
        %v594 = vadd.f32 0.0, %v593
        %v595 = vand.u32 %v543, 4294901760
        %v596 = vsub.f32 %v543, %v595
        %v597 = vand.u32 %v596, 4294901760
        %v598 = vsub.f32 %v596, %v597
        %v599 = vand.u32 %v598, 4294901760
        %600 = vmatmul.f32.gmra.mxu0 %v599
        %v601 = vpop.f32.mrf.mxu0
        %v602 = vadd.f32 0.0, %v601
        %v603 = vand.u32 %v544, 4294901760
        %v604 = vsub.f32 %v544, %v603
        %v605 = vand.u32 %v604, 4294901760
        %v606 = vsub.f32 %v604, %v605
        %v607 = vand.u32 %v606, 4294901760
        %608 = vmatmul.f32.gmra.mxu0 %v607
        %v609 = vpop.f32.mrf.mxu0
        %v610 = vadd.f32 0.0, %v609
        %v611 = vand.u32 %v545, 4294901760
        %v612 = vsub.f32 %v545, %v611
        %v613 = vand.u32 %v612, 4294901760
        %v614 = vsub.f32 %v612, %v613
        %v615 = vand.u32 %v614, 4294901760
        %616 = vmatmul.f32.gmra.mxu0 %v615
        %v617 = vpop.f32.mrf.mxu0
        %v618 = vadd.f32 0.0, %v617
        %v619 = vand.u32 %v546, 4294901760
        %v620 = vsub.f32 %v546, %v619
        %v621 = vand.u32 %v620, 4294901760
        %v622 = vsub.f32 %v620, %v621
        %v623 = vand.u32 %v622, 4294901760
        %624 = vmatmul.f32.gmra.mxu0 %v623
        %v625 = vpop.f32.mrf.mxu0
        %v626 = vadd.f32 0.0, %v625
        %627 = vdwg.mxu0
        %628 = vmatpush.msra.mxu0 0.0
        %629 = vmatpush.msra.mxu0 0.0
        %630 = vmatpush.msra.mxu0 0.0
        %631 = vmatpush.msra.mxu0 0.0
        %632 = vmatpush.msra.mxu0 0.0
        %633 = vmatpush.msra.mxu0 0.0
        %634 = vmatpush.msra.mxu0 0.0
        %635 = vmatpush.msra.mxu0 0.0
        %636 = vmatpush.msra.mxu0 0.0
        %637 = vmatpush.msra.mxu0 0.0
        %638 = vmatpush.msra.mxu0 0.0
        %639 = vmatpush.msra.mxu0 0.0
        %640 = vmatpush.msra.mxu0 0.0
        %641 = vmatpush.msra.mxu0 0.0
        %642 = vmatpush.msra.mxu0 0.0
        %643 = vmatpush.msra.mxu0 0.0
        %v644 = vand.u32 %v539, 4294901760
        %645 = vmatmul.f32.gmra.mxu0 %v644
        %v646 = vpop.f32.mrf.mxu0
        %v647 = vadd.f32 %v570, %v646
        %v648 = vand.u32 %v540, 4294901760
        %649 = vmatmul.f32.gmra.mxu0 %v648
        %v650 = vpop.f32.mrf.mxu0
        %v651 = vadd.f32 %v578, %v650
        %v652 = vand.u32 %v541, 4294901760
        %653 = vmatmul.f32.gmra.mxu0 %v652
        %v654 = vpop.f32.mrf.mxu0
        %v655 = vadd.f32 %v586, %v654
        %v656 = vand.u32 %v542, 4294901760
        %657 = vmatmul.f32.gmra.mxu0 %v656
        %v658 = vpop.f32.mrf.mxu0
        %v659 = vadd.f32 %v594, %v658
        %v660 = vand.u32 %v543, 4294901760
        %661 = vmatmul.f32.gmra.mxu0 %v660
        %v662 = vpop.f32.mrf.mxu0
        %v663 = vadd.f32 %v602, %v662
        %v664 = vand.u32 %v544, 4294901760
        %665 = vmatmul.f32.gmra.mxu0 %v664
        %v666 = vpop.f32.mrf.mxu0
        %v667 = vadd.f32 %v610, %v666
        %v668 = vand.u32 %v545, 4294901760
        %669 = vmatmul.f32.gmra.mxu0 %v668
        %v670 = vpop.f32.mrf.mxu0
        %v671 = vadd.f32 %v618, %v670
        %v672 = vand.u32 %v546, 4294901760
        %673 = vmatmul.f32.gmra.mxu0 %v672
        %v674 = vpop.f32.mrf.mxu0
        %v675 = vadd.f32 %v626, %v674
        %676 = vdwg.mxu0
        %677 = vmatpush.msra.mxu0 0.0
        %678 = vmatpush.msra.mxu0 0.0
        %679 = vmatpush.msra.mxu0 0.0
        %680 = vmatpush.msra.mxu0 0.0
        %681 = vmatpush.msra.mxu0 0.0
        %682 = vmatpush.msra.mxu0 0.0
        %683 = vmatpush.msra.mxu0 0.0
        %684 = vmatpush.msra.mxu0 0.0
        %685 = vmatpush.msra.mxu0 0.0
        %686 = vmatpush.msra.mxu0 0.0
        %687 = vmatpush.msra.mxu0 0.0
        %688 = vmatpush.msra.mxu0 0.0
        %689 = vmatpush.msra.mxu0 0.0
        %690 = vmatpush.msra.mxu0 0.0
        %691 = vmatpush.msra.mxu0 0.0
        %692 = vmatpush.msra.mxu0 0.0
        %v693 = vand.u32 %v539, 4294901760
        %v694 = vsub.f32 %v539, %v693
        %695 = vmatmul.f32.gmra.mxu0 %v694
        %v696 = vpop.f32.mrf.mxu0
        %v697 = vadd.f32 %v647, %v696
        %v698 = vand.u32 %v540, 4294901760
        %v699 = vsub.f32 %v540, %v698
        %700 = vmatmul.f32.gmra.mxu0 %v699
        %v701 = vpop.f32.mrf.mxu0
        %v702 = vadd.f32 %v651, %v701
        %v703 = vand.u32 %v541, 4294901760
        %v704 = vsub.f32 %v541, %v703
        %705 = vmatmul.f32.gmra.mxu0 %v704
        %v706 = vpop.f32.mrf.mxu0
        %v707 = vadd.f32 %v655, %v706
        %v708 = vand.u32 %v542, 4294901760
        %v709 = vsub.f32 %v542, %v708
        %710 = vmatmul.f32.gmra.mxu0 %v709
        %v711 = vpop.f32.mrf.mxu0
        %v712 = vadd.f32 %v659, %v711
        %v713 = vand.u32 %v543, 4294901760
        %v714 = vsub.f32 %v543, %v713
        %715 = vmatmul.f32.gmra.mxu0 %v714
        %v716 = vpop.f32.mrf.mxu0
        %v717 = vadd.f32 %v663, %v716
        %v718 = vand.u32 %v544, 4294901760
        %v719 = vsub.f32 %v544, %v718
        %720 = vmatmul.f32.gmra.mxu0 %v719
        %v721 = vpop.f32.mrf.mxu0
        %v722 = vadd.f32 %v667, %v721
        %v723 = vand.u32 %v545, 4294901760
        %v724 = vsub.f32 %v545, %v723
        %725 = vmatmul.f32.gmra.mxu0 %v724
        %v726 = vpop.f32.mrf.mxu0
        %v727 = vadd.f32 %v671, %v726
        %v728 = vand.u32 %v546, 4294901760
        %v729 = vsub.f32 %v546, %v728
        %730 = vmatmul.f32.gmra.mxu0 %v729
        %v731 = vpop.f32.mrf.mxu0
        %v732 = vadd.f32 %v675, %v731
        %733 = vdwg.mxu0
        %734 = vmatpush.msra.mxu0 1.0
        %735 = vmatpush.msra.mxu0 1.0
        %736 = vmatpush.msra.mxu0 1.0
        %737 = vmatpush.msra.mxu0 1.0
        %738 = vmatpush.msra.mxu0 1.0
        %739 = vmatpush.msra.mxu0 1.0
        %740 = vmatpush.msra.mxu0 1.0
        %741 = vmatpush.msra.mxu0 1.0
        %742 = vmatpush.msra.mxu0 1.0
        %743 = vmatpush.msra.mxu0 1.0
        %744 = vmatpush.msra.mxu0 1.0
        %745 = vmatpush.msra.mxu0 1.0
        %746 = vmatpush.msra.mxu0 1.0
        %747 = vmatpush.msra.mxu0 1.0
        %748 = vmatpush.msra.mxu0 1.0
        %749 = vmatpush.msra.mxu0 1.0
        %v750 = vand.u32 %v539, 4294901760
        %v751 = vsub.f32 %v539, %v750
        %v752 = vand.u32 %v751, 4294901760
        %753 = vmatmul.f32.gmra.mxu0 %v752
        %v754 = vpop.f32.mrf.mxu0
        %v755 = vadd.f32 %v697, %v754
        %v756 = vand.u32 %v540, 4294901760
        %v757 = vsub.f32 %v540, %v756
        %v758 = vand.u32 %v757, 4294901760
        %759 = vmatmul.f32.gmra.mxu0 %v758
        %v760 = vpop.f32.mrf.mxu0
        %v761 = vadd.f32 %v702, %v760
        %v762 = vand.u32 %v541, 4294901760
        %v763 = vsub.f32 %v541, %v762
        %v764 = vand.u32 %v763, 4294901760
        %765 = vmatmul.f32.gmra.mxu0 %v764
        %v766 = vpop.f32.mrf.mxu0
        %v767 = vadd.f32 %v707, %v766
        %v768 = vand.u32 %v542, 4294901760
        %v769 = vsub.f32 %v542, %v768
        %v770 = vand.u32 %v769, 4294901760
        %771 = vmatmul.f32.gmra.mxu0 %v770
        %v772 = vpop.f32.mrf.mxu0
        %v773 = vadd.f32 %v712, %v772
        %v774 = vand.u32 %v543, 4294901760
        %v775 = vsub.f32 %v543, %v774
        %v776 = vand.u32 %v775, 4294901760
        %777 = vmatmul.f32.gmra.mxu0 %v776
        %v778 = vpop.f32.mrf.mxu0
        %v779 = vadd.f32 %v717, %v778
        %v780 = vand.u32 %v544, 4294901760
        %v781 = vsub.f32 %v544, %v780
        %v782 = vand.u32 %v781, 4294901760
        %783 = vmatmul.f32.gmra.mxu0 %v782
        %v784 = vpop.f32.mrf.mxu0
        %v785 = vadd.f32 %v722, %v784
        %v786 = vand.u32 %v545, 4294901760
        %v787 = vsub.f32 %v545, %v786
        %v788 = vand.u32 %v787, 4294901760
        %789 = vmatmul.f32.gmra.mxu0 %v788
        %v790 = vpop.f32.mrf.mxu0
        %v791 = vadd.f32 %v727, %v790
        %v792 = vand.u32 %v546, 4294901760
        %v793 = vsub.f32 %v546, %v792
        %v794 = vand.u32 %v793, 4294901760
        %795 = vmatmul.f32.gmra.mxu0 %v794
        %v796 = vpop.f32.mrf.mxu0
        %v797 = vadd.f32 %v732, %v796
        %798 = vdwg.mxu0
        %799 = vmatpush.msra.mxu0 0.0
        %800 = vmatpush.msra.mxu0 0.0
        %801 = vmatpush.msra.mxu0 0.0
        %802 = vmatpush.msra.mxu0 0.0
        %803 = vmatpush.msra.mxu0 0.0
        %804 = vmatpush.msra.mxu0 0.0
        %805 = vmatpush.msra.mxu0 0.0
        %806 = vmatpush.msra.mxu0 0.0
        %807 = vmatpush.msra.mxu0 0.0
        %808 = vmatpush.msra.mxu0 0.0
        %809 = vmatpush.msra.mxu0 0.0
        %810 = vmatpush.msra.mxu0 0.0
        %811 = vmatpush.msra.mxu0 0.0
        %812 = vmatpush.msra.mxu0 0.0
        %813 = vmatpush.msra.mxu0 0.0
        %814 = vmatpush.msra.mxu0 0.0
        %v815 = vand.u32 %v539, 4294901760
        %816 = vmatmul.f32.gmra.mxu0 %v815
        %v817 = vpop.f32.mrf.mxu0
        %v818 = vadd.f32 %v755, %v817
        %v819 = vand.u32 %v540, 4294901760
        %820 = vmatmul.f32.gmra.mxu0 %v819
        %v821 = vpop.f32.mrf.mxu0
        %v822 = vadd.f32 %v761, %v821
        %v823 = vand.u32 %v541, 4294901760
        %824 = vmatmul.f32.gmra.mxu0 %v823
        %v825 = vpop.f32.mrf.mxu0
        %v826 = vadd.f32 %v767, %v825
        %v827 = vand.u32 %v542, 4294901760
        %828 = vmatmul.f32.gmra.mxu0 %v827
        %v829 = vpop.f32.mrf.mxu0
        %v830 = vadd.f32 %v773, %v829
        %v831 = vand.u32 %v543, 4294901760
        %832 = vmatmul.f32.gmra.mxu0 %v831
        %v833 = vpop.f32.mrf.mxu0
        %v834 = vadd.f32 %v779, %v833
        %v835 = vand.u32 %v544, 4294901760
        %836 = vmatmul.f32.gmra.mxu0 %v835
        %v837 = vpop.f32.mrf.mxu0
        %v838 = vadd.f32 %v785, %v837
        %v839 = vand.u32 %v545, 4294901760
        %840 = vmatmul.f32.gmra.mxu0 %v839
        %v841 = vpop.f32.mrf.mxu0
        %v842 = vadd.f32 %v791, %v841
        %v843 = vand.u32 %v546, 4294901760
        %844 = vmatmul.f32.gmra.mxu0 %v843
        %v845 = vpop.f32.mrf.mxu0
        %v846 = vadd.f32 %v797, %v845
        %847 = vdwg.mxu0
        %848 = vmatpush.msra.mxu0 1.0
        %849 = vmatpush.msra.mxu0 1.0
        %850 = vmatpush.msra.mxu0 1.0
        %851 = vmatpush.msra.mxu0 1.0
        %852 = vmatpush.msra.mxu0 1.0
        %853 = vmatpush.msra.mxu0 1.0
        %854 = vmatpush.msra.mxu0 1.0
        %855 = vmatpush.msra.mxu0 1.0
        %856 = vmatpush.msra.mxu0 1.0
        %857 = vmatpush.msra.mxu0 1.0
        %858 = vmatpush.msra.mxu0 1.0
        %859 = vmatpush.msra.mxu0 1.0
        %860 = vmatpush.msra.mxu0 1.0
        %861 = vmatpush.msra.mxu0 1.0
        %862 = vmatpush.msra.mxu0 1.0
        %863 = vmatpush.msra.mxu0 1.0
        %v864 = vand.u32 %v539, 4294901760
        %865 = vmatmul.f32.gmra.mxu0 %v864
        %v866 = vpop.f32.mrf.mxu0
        %v867 = vadd.f32 %v818, %v866
        %v868 = vand.u32 %v540, 4294901760
        %869 = vmatmul.f32.gmra.mxu0 %v868
        %v870 = vpop.f32.mrf.mxu0
        %v871 = vadd.f32 %v822, %v870
        %v872 = vand.u32 %v541, 4294901760
        %873 = vmatmul.f32.gmra.mxu0 %v872
        %v874 = vpop.f32.mrf.mxu0
        %v875 = vadd.f32 %v826, %v874
        %v876 = vand.u32 %v542, 4294901760
        %877 = vmatmul.f32.gmra.mxu0 %v876
        %v878 = vpop.f32.mrf.mxu0
        %v879 = vadd.f32 %v830, %v878
        %v880 = vand.u32 %v543, 4294901760
        %881 = vmatmul.f32.gmra.mxu0 %v880
        %v882 = vpop.f32.mrf.mxu0
        %v883 = vadd.f32 %v834, %v882
        %v884 = vand.u32 %v544, 4294901760
        %885 = vmatmul.f32.gmra.mxu0 %v884
        %v886 = vpop.f32.mrf.mxu0
        %v887 = vadd.f32 %v838, %v886
        %v888 = vand.u32 %v545, 4294901760
        %889 = vmatmul.f32.gmra.mxu0 %v888
        %v890 = vpop.f32.mrf.mxu0
        %v891 = vadd.f32 %v842, %v890
        %v892 = vand.u32 %v546, 4294901760
        %893 = vmatmul.f32.gmra.mxu0 %v892
        %v894 = vpop.f32.mrf.mxu0
        %v895 = vadd.f32 %v846, %v894
        %896 = vdwg.mxu0
        %v897 = vld [vmem:[%s153] sm:$0xff]
        %v898 = vld [vmem:[%s153 + $0x8] sm:$0xff]
        %v899 = vld [vmem:[%s153 + $0x10] sm:$0xff]
        %v900 = vld [vmem:[%s153 + $0x18] sm:$0xff]
        %v901 = vld [vmem:[%s153 + $0x20] sm:$0xff]
        %v902 = vld [vmem:[%s153 + $0x28] sm:$0xff]
        %v903 = vld [vmem:[%s153 + $0x30] sm:$0xff]
        %v904 = vld [vmem:[%s153 + $0x38] sm:$0xff]
        %913 = vrot.lane.b32.xlu0 %v867, 1
        %v914 = vpop.permute.xlu0 %913
        %915 = vrot.lane.b32.xlu0 %v871, 1
        %v916 = vpop.permute.xlu0 %915
        %917 = vrot.lane.b32.xlu0 %v875, 1
        %v918 = vpop.permute.xlu0 %917
        %919 = vrot.lane.b32.xlu0 %v879, 1
        %v920 = vpop.permute.xlu0 %919
        %921 = vrot.lane.b32.xlu0 %v883, 1
        %v922 = vpop.permute.xlu0 %921
        %923 = vrot.lane.b32.xlu0 %v887, 1
        %v924 = vpop.permute.xlu0 %923
        %925 = vrot.lane.b32.xlu0 %v891, 1
        %v926 = vpop.permute.xlu0 %925
        %927 = vrot.lane.b32.xlu0 %v895, 1
        %v928 = vpop.permute.xlu0 %927
        %vm937 = vcmask 7168
        %v938 = vsel %vm937, %v509, %v914
        %v939 = vsel %vm937, %v513, %v916
        %v940 = vsel %vm937, %v517, %v918
        %v941 = vsel %vm937, %v521, %v920
        %v942 = vsel %vm937, %v525, %v922
        %v943 = vsel %vm937, %v529, %v924
        %v944 = vsel %vm937, %v533, %v926
        %v945 = vsel %vm937, %v537, %v928
        %v946 = vadd.f32 %v897, %v938
        %v947 = vadd.f32 %v898, %v939
        %v948 = vadd.f32 %v899, %v940
        %v949 = vadd.f32 %v900, %v941
        %v950 = vadd.f32 %v901, %v942
        %v951 = vadd.f32 %v902, %v943
        %v952 = vadd.f32 %v903, %v944
        %v953 = vadd.f32 %v904, %v945
        %vm954 = vcmask 15360
        %955 = vst.msk [vmem:[%s153] sm:$0xff] %vm954, %v946
        %956 = vst.msk [vmem:[%s153 + $0x8] sm:$0xff] %vm954, %v947
        %957 = vst.msk [vmem:[%s153 + $0x10] sm:$0xff] %vm954, %v948
        %958 = vst.msk [vmem:[%s153 + $0x18] sm:$0xff] %vm954, %v949
        %959 = vst.msk [vmem:[%s153 + $0x20] sm:$0xff] %vm954, %v950
        %960 = vst.msk [vmem:[%s153 + $0x28] sm:$0xff] %vm954, %v951
        %961 = vst.msk [vmem:[%s153 + $0x30] sm:$0xff] %vm954, %v952
        %962 = vst.msk [vmem:[%s153 + $0x38] sm:$0xff] %vm954, %v953
        %p963 = scmp.lt.s32.totalorder %s19, 1
        %s964 = scalar_select %p963, %s19, 1
        %s965 = smul.addr %s964, 8
        %s966 = smul.addr %s965, 8
        %s967 = scalar_lea.vmem %s1, %s966
        // Predicated region
        $region33: #{tpu_custom_call.1} parent=23 // pred_check
          %p968 = pneg %p73
        $region34: #{tpu_custom_call.1} parent=23 // pred_check_branch
          %970 = sbr.rel (%p968) target = $region36
        $region35: #{tpu_custom_call.1} parent=23 // pred_region
          _
        $region36: #{tpu_custom_call.1} parent=23 // pred_fallthru
          _
      $region24: #{tpu_custom_call.1} parent=5 // pred_fallthru
        _
      %p971 = scmp.le.s32.totalorder 2, %s10
      // Predicated region
      $region37: #{tpu_custom_call.1} parent=5 // pred_check
        %p972 = pneg %p971
      $region38: #{tpu_custom_call.1} parent=5 // pred_check_branch
        %974 = sbr.rel (%p972) target = $region40
      $region39: #{tpu_custom_call.1} parent=5 // pred_region
        %s975 = ssub.s32 %s10, 2
        // Predicated region
        $region41: #{tpu_custom_call.1} parent=39 // pred_check
          %p976 = pneg %p79
        $region42: #{tpu_custom_call.1} parent=39 // pred_check_branch
          %978 = sbr.rel (%p976) target = $region44
        $region43: #{tpu_custom_call.1} parent=39 // pred_region
          %p979 = scmp.lt.s32.totalorder %s21, 1
          %s980 = scalar_select %p979, %s21, 1
          %s981 = smul.addr %s980, 8
          %s982 = smul.addr %s981, 8
          %s983 = scalar_lea.vmem %s1, %s982
        $region44: #{tpu_custom_call.1} parent=39 // pred_fallthru
          _
      $region40: #{tpu_custom_call.1} parent=5 // pred_fallthru
        _
    $region6: #{tpu_custom_call.1} parent=1 // loop_footer
      %s14 = sadd.s32 1, %s10
    $region7: #{tpu_custom_call.1} parent=1 // loop_footer_branch
      %9 = sbr.rel target = $region3
    $region8: #{tpu_custom_call.1} parent=1 // loop_exit
      _
    %984 = vsyncpa [#allocation3], 1
    %s985 = scalar_lea.sflag [#allocation3], 1
    %986 = vsyncpa %s985, 1

</llo_original>
